<compile_context>
chip_gen: v5e
topology: v5e:2x2
jax: 0.10.0
libtpu: 0.0.40
codegen_flags: <defaults>
</compile_context>

<pallas_src>
import functools

import jax
import jax.numpy as jnp
from jax.experimental import pallas as pl
from jax.experimental.pallas import tpu as pltpu


# --------------------------------------------------------------------------- #
# Kernel                                                                      #
# --------------------------------------------------------------------------- #
def _init_embedder_kernel(f2d_ref, left_ref, right_ref,
                          w1_ref, b1_ref, w2a_ref, w2b_ref, b2_ref,
                          gamma_ref, beta_ref, out_ref):
    tile_rows = f2d_ref.shape[0]             # tile_i * L flattened pair rows
    d_hidden = right_ref.shape[-1]
    cdt = w1_ref.dtype                        # compute / matmul operand dtype

    # ---- linear1 on the MXU (tiny K is fine: the MXU slot has slack while the
    # VALU is the critical unit, so no VPU rank-1 path).
    p1 = jnp.dot(f2d_ref[...], w1_ref[...], preferred_element_type=cdt) + b1_ref[...]
    p1 = jnp.maximum(p1, 0.0)                 # relu of the pair projection (cdt)

    # ---- left[:, None, :] + right[None, :, :], relu — in the compute dtype
    # (bf16 on v6e/v7x halves these VPU passes; operands pre-cast in wrapper).
    lr = left_ref[...][:, None, :] + right_ref[...][None, :, :]   # (tile_i, L, d_h)
    lr = jnp.maximum(lr, 0.0).reshape(tile_rows, d_hidden)

    # ---- linear2 with pre-split W2 (concat eliminated), f32 accumulation ----
    h = (jnp.dot(p1, w2a_ref[...], preferred_element_type=jnp.float32)
         + jnp.dot(lr, w2b_ref[...], preferred_element_type=jnp.float32)
         + b2_ref[...])

    # ---- LayerNorm over the feature axis (two-pass variance, eps = 1e-5) ----
    mean = jnp.mean(h, axis=-1, keepdims=True)
    dev = h - mean
    var = jnp.mean(dev * dev, axis=-1, keepdims=True)
    inv = jax.lax.rsqrt(var + 1e-5)           # EUP slot, off the VALU
    out_ref[...] = (dev * inv * gamma_ref[...] + beta_ref[...]).astype(out_ref.dtype)


# --------------------------------------------------------------------------- #
# Tile sizing helpers                                                         #
# --------------------------------------------------------------------------- #
def _lane_pad(n):
    return ((n + 127) // 128) * 128


def _vmem_estimate(tile_rows, d_f2d, d_hidden, mm_bytes, out_bytes):
    """Double-buffered pipelined blocks + f32 full-tile intermediate upper bound.

    The (tile_rows, d_f2d) block is lane-sparse: it occupies full (·,128) tiles
    in VMEM, so it is budgeted at the padded lane width.
    """
    f2d_blk = tile_rows * _lane_pad(d_f2d) * mm_bytes
    out_blk = tile_rows * _lane_pad(d_hidden) * out_bytes
    interm = 3 * tile_rows * _lane_pad(d_hidden) * 4        # p1, lr, h (f32)
    return 2 * f2d_blk + 2 * out_blk + interm


def _choose_tile_i(L, d_f2d, d_hidden, mm_bytes, out_bytes,
                   vmem_budget=20 * 1024 * 1024, row_cap=8192):
    """Largest divisor tile that fits the VMEM budget, preferring >=2 (even) blocks."""
    cands = sorted(d for d in range(1, L + 1)
                   if L % d == 0 and (d % 8 == 0 or d == L))
    fits = [d for d in cands
            if d * L <= row_cap
            and _vmem_estimate(d * L, d_f2d, d_hidden, mm_bytes, out_bytes) <= vmem_budget]
    if not fits:
        fits = [cands[0]]                     # smallest legal tile as a fallback
    best = fits[-1]
    # Prefer >=2 blocks (megacore sharding / v7x 2-TC split), even block count
    # when possible, as long as the tile stays >= half the largest fit.
    multi = [d for d in fits if L // d >= 2 and 2 * d >= best]
    if multi:
        even = [d for d in multi if (L // d) % 2 == 0]
        best = (even or multi)[-1]
    return best


# --------------------------------------------------------------------------- #
# Wrapper                                                                     #
# --------------------------------------------------------------------------- #
@functools.partial(jax.jit, static_argnames=("tile_i", "matmul_dtype", "out_dtype"))
def init_embedder_2d(f1d, f2d, params, *, tile_i=None,
                     matmul_dtype=jnp.float32, out_dtype=jnp.float32):
    L = f1d.shape[0]
    d_f2d = f2d.shape[-1]
    d_hidden = params["w1"].shape[1]
    mm_dtype = jnp.dtype(matmul_dtype)
    o_dtype = jnp.dtype(out_dtype)

    # Tiny 1-D projections as XLA glue (two L x d_f1d matmuls are negligible);
    # pre-cast to the compute dtype so the kernel performs zero cast passes.
    left = (f1d @ params["w_left"] + params["b_left"]).astype(mm_dtype)
    right = (f1d @ params["w_right"] + params["b_right"]).astype(mm_dtype)

    # Pre-split W2 so the kernel never materializes the 2*d_hidden concat.
    w2a = params["w2"][:d_hidden].astype(mm_dtype)
    w2b = params["w2"][d_hidden:].astype(mm_dtype)
    w1 = params["w1"].astype(mm_dtype)
    b1 = params["b1"].reshape(1, d_hidden).astype(mm_dtype)
    b2 = params["b2"].reshape(1, d_hidden).astype(jnp.float32)
    gamma = params["ln_gamma"].reshape(1, d_hidden).astype(jnp.float32)
    beta = params["ln_beta"].reshape(1, d_hidden).astype(jnp.float32)

    # Row-major flatten is free; every kernel block is a plain 2-D slab.
    f2d_flat = f2d.reshape(L * L, d_f2d).astype(mm_dtype)

    mm_bytes = mm_dtype.itemsize
    out_bytes = o_dtype.itemsize
    if tile_i is None:
        tile_i = _choose_tile_i(L, d_f2d, d_hidden, mm_bytes, out_bytes)
    if L % tile_i != 0 or not (tile_i % 8 == 0 or tile_i == L):
        raise ValueError("tile_i must divide L and be a multiple of 8 (or == L)")

    n_blk = L // tile_i
    tile_rows = tile_i * L

    # Derive a modest scoped-VMEM cap from the actual requirement; never claim
    # the entire 64 MiB of a v7x TensorCore.
    est = _vmem_estimate(tile_rows, d_f2d, d_hidden, mm_bytes, out_bytes)
    vmem_limit = int(min(48 * 1024 * 1024, max(16 * 1024 * 1024, 2 * est)))

    # TODO(synk): if production d_hidden < 128, fold 128//d_hidden logical rows
    # per 128-lane row (same row-major bytes) for a lane-dense output and full
    # lane utilization; here d_hidden is the full feature extent so all blocks
    # are legal, just lane-underutilized when d_hidden < 128.
    out_flat = pl.pallas_call(
        _init_embedder_kernel,
        out_shape=jax.ShapeDtypeStruct((L * L, d_hidden), o_dtype),
        grid_spec=pltpu.PrefetchScalarGridSpec(
            num_scalar_prefetch=0,
            grid=(n_blk,),
            in_specs=[
                pl.BlockSpec((tile_rows, d_f2d), lambda i: (i, 0)),    # f2d rows
                pl.BlockSpec((tile_i, d_hidden), lambda i: (i, 0)),    # left rows
                pl.BlockSpec((L, d_hidden), lambda i: (0, 0)),         # right (resident)
                pl.BlockSpec((d_f2d, d_hidden), lambda i: (0, 0)),     # W1
                pl.BlockSpec((1, d_hidden), lambda i: (0, 0)),         # b1
                pl.BlockSpec((d_hidden, d_hidden), lambda i: (0, 0)),  # W2 (pair half)
                pl.BlockSpec((d_hidden, d_hidden), lambda i: (0, 0)),  # W2 (lr half)
                pl.BlockSpec((1, d_hidden), lambda i: (0, 0)),         # b2
                pl.BlockSpec((1, d_hidden), lambda i: (0, 0)),         # LN gamma
                pl.BlockSpec((1, d_hidden), lambda i: (0, 0)),         # LN beta
            ],
            out_specs=pl.BlockSpec((tile_rows, d_hidden), lambda i: (i, 0)),
        ),
        compiler_params=pltpu.CompilerParams(
            dimension_semantics=("parallel",),
            vmem_limit_bytes=vmem_limit,
        ),
    )(f2d_flat, left, right, w1, b1, w2a, w2b, b2, gamma, beta)

    return out_flat.reshape(L, L, d_hidden)


# --------------------------------------------------------------------------- #
# Reference & test harness                                                    #
# --------------------------------------------------------------------------- #
def _reference(f1d, f2d, params):
    """Pure-JAX reference mirroring the PyTorch forward."""
    left = f1d @ params["w_left"] + params["b_left"]
    right = f1d @ params["w_right"] + params["b_right"]
    left_right = left[:, None, :] + right[None, :, :]
    pair = f2d @ params["w1"] + params["b1"]
    pair = jnp.concatenate([pair, left_right], axis=-1)
    pair = jnp.maximum(pair, 0.0)
    pair = pair @ params["w2"] + params["b2"]
    mean = jnp.mean(pair, axis=-1, keepdims=True)
    var = jnp.mean((pair - mean) ** 2, axis=-1, keepdims=True)
    pair = (pair - mean) / jnp.sqrt(var + 1e-5)
    return pair * params["ln_gamma"] + params["ln_beta"]


def make_params(key, d_f1d, d_f2d, d_hidden):
    """Deterministic synthetic parameters (stored as (in, out) matrices)."""
    ks = jax.random.split(key, 8)
    scale = 0.1
    return {
        "w_left": scale * jax.random.normal(ks[0], (d_f1d, d_hidden), jnp.float32),
        "b_left": scale * jax.random.normal(ks[1], (d_hidden,), jnp.float32),
        "w_right": scale * jax.random.normal(ks[2], (d_f1d, d_hidden), jnp.float32),
        "b_right": scale * jax.random.normal(ks[3], (d_hidden,), jnp.float32),
        "w1": scale * jax.random.normal(ks[4], (d_f2d, d_hidden), jnp.float32),
        "b1": scale * jax.random.normal(ks[5], (d_hidden,), jnp.float32),
        "w2": scale * jax.random.normal(ks[6], (2 * d_hidden, d_hidden), jnp.float32),
        "b2": scale * jax.random.normal(ks[7], (d_hidden,), jnp.float32),
        "ln_gamma": jnp.ones((d_hidden,), jnp.float32),
        "ln_beta": jnp.zeros((d_hidden,), jnp.float32),
    }


if __name__ == "__main__":
    key = jax.random.PRNGKey(0)

    # --- Case 1: module-spec small shapes (d_hidden=32) ---------------------
    L, d_f1d, d_f2d, d_hidden = 16, 8, 4, 32
    k1, k2, k3, key = jax.random.split(key, 4)
    f1d = jax.random.normal(k1, (L, d_f1d), jnp.float32)
    f2d = jax.random.normal(k2, (L, L, d_f2d), jnp.float32)
    params = make_params(k3, d_f1d, d_f2d, d_hidden)
    ref = _reference(f1d, f2d, params)

    # f32 path: numerically faithful to the PyTorch module.
    out = jax.block_until_ready(init_embedder_2d(f1d, f2d, params))
    assert out.shape == (L, L, d_hidden)
    assert jnp.allclose(out, ref, atol=1e-4, rtol=1e-4), "f32 path mismatch vs reference"

    # bf16 operands + bf16 elementwise + bf16 output (v6e/v7x fast path, and
    # halved writeback on v5e); looser tolerance is inherent to bf16.
    out_bf16 = jax.block_until_ready(
        init_embedder_2d(f1d, f2d, params,
                         matmul_dtype=jnp.bfloat16, out_dtype=jnp.bfloat16))
    assert out_bf16.shape == (L, L, d_hidden)
    assert jnp.allclose(out_bf16.astype(jnp.float32), ref, atol=1e-1, rtol=1e-1), \
        "bf16 path mismatch vs reference"

    # --- Case 2: lane-dense d_hidden=128, multi-block grid (L=32 -> 2 blocks)
    L2, d_hidden2 = 32, 128
    k1, k2, k3, key = jax.random.split(key, 4)
    f1d2 = jax.random.normal(k1, (L2, d_f1d), jnp.float32)
    f2d2 = jax.random.normal(k2, (L2, L2, d_f2d), jnp.float32)
    params2 = make_params(k3, d_f1d, d_f2d, d_hidden2)
    ref2 = _reference(f1d2, f2d2, params2)
    out2 = jax.block_until_ready(init_embedder_2d(f1d2, f2d2, params2))
    assert out2.shape == (L2, L2, d_hidden2)
    assert jnp.allclose(out2, ref2, atol=2e-4, rtol=2e-4), \
        "f32 path (d_hidden=128, multi-block) mismatch vs reference"

    print("KERNEL_OK")
</pallas_src>

<mosaic_0001>
module attributes {stable_mosaic.version = 11 : i64} {
  func.func @_init_embedder_kernel(%arg0: i32, %arg1: memref<128x4xf32, #tpu.memory_space<vmem>>, %arg2: memref<8x32xf32, #tpu.memory_space<vmem>>, %arg3: memref<16x32xf32, #tpu.memory_space<vmem>>, %arg4: memref<4x32xf32, #tpu.memory_space<vmem>>, %arg5: memref<1x32xf32, #tpu.memory_space<vmem>>, %arg6: memref<32x32xf32, #tpu.memory_space<vmem>>, %arg7: memref<32x32xf32, #tpu.memory_space<vmem>>, %arg8: memref<1x32xf32, #tpu.memory_space<vmem>>, %arg9: memref<1x32xf32, #tpu.memory_space<vmem>>, %arg10: memref<1x32xf32, #tpu.memory_space<vmem>>, %arg11: memref<128x32xf32, #tpu.memory_space<vmem>>) attributes {dimension_semantics = [#tpu.dimension_semantics<parallel>], iteration_bounds = array<i64: 2>, scalar_prefetch = 0 : i64, scratch_operands = 0 : i64, tpu.core_type = #tpu.core_type<tc>, window_params = [{transform_indices = @transform_0, window_bounds = array<i64: 128, 4>}, {transform_indices = @transform_1, window_bounds = array<i64: 8, 32>}, {pipeline_mode = #tpu.pipeline_mode<synchronous>, transform_indices = @transform_2, window_bounds = array<i64: 16, 32>}, {pipeline_mode = #tpu.pipeline_mode<synchronous>, transform_indices = @transform_3, window_bounds = array<i64: 4, 32>}, {pipeline_mode = #tpu.pipeline_mode<synchronous>, transform_indices = @transform_4, window_bounds = array<i64: 1, 32>}, {pipeline_mode = #tpu.pipeline_mode<synchronous>, transform_indices = @transform_5, window_bounds = array<i64: 32, 32>}, {pipeline_mode = #tpu.pipeline_mode<synchronous>, transform_indices = @transform_6, window_bounds = array<i64: 32, 32>}, {pipeline_mode = #tpu.pipeline_mode<synchronous>, transform_indices = @transform_7, window_bounds = array<i64: 1, 32>}, {pipeline_mode = #tpu.pipeline_mode<synchronous>, transform_indices = @transform_8, window_bounds = array<i64: 1, 32>}, {pipeline_mode = #tpu.pipeline_mode<synchronous>, transform_indices = @transform_9, window_bounds = array<i64: 1, 32>}, {transform_indices = @transform_10, window_bounds = array<i64: 128, 32>}]} {
    %c0 = arith.constant 0 : index
    %c0_0 = arith.constant 0 : index
    %0 = vector.load %arg1[%c0, %c0_0] : memref<128x4xf32, #tpu.memory_space<vmem>>, vector<128x4xf32>
    %c0_1 = arith.constant 0 : index
    %c0_2 = arith.constant 0 : index
    %1 = vector.load %arg4[%c0_1, %c0_2] : memref<4x32xf32, #tpu.memory_space<vmem>>, vector<4x32xf32>
    %cst = arith.constant dense<0.000000e+00> : vector<128x32xf32>
    %2 = tpu.matmul %0, %1, %cst {dimension_numbers = #tpu.dot_dimension_numbers<[1], [0], [0], [1], [0, 0, 1, 1], [], []>} : vector<128x4xf32>, vector<4x32xf32>, vector<128x32xf32> -> vector<128x32xf32>
    %c0_3 = arith.constant 0 : index
    %c0_4 = arith.constant 0 : index
    %3 = vector.load %arg5[%c0_3, %c0_4] : memref<1x32xf32, #tpu.memory_space<vmem>>, vector<1x32xf32>
    %4 = vector.broadcast %3 : vector<1x32xf32> to vector<128x32xf32>
    %5 = arith.addf %2, %4 : vector<128x32xf32>
    %cst_5 = arith.constant 0.000000e+00 : f32
    %6 = vector.broadcast %cst_5 : f32 to vector<128x32xf32>
    %7 = arith.maximumf %5, %6 : vector<128x32xf32>
    %c0_6 = arith.constant 0 : index
    %c0_7 = arith.constant 0 : index
    %8 = vector.load %arg2[%c0_6, %c0_7] : memref<8x32xf32, #tpu.memory_space<vmem>>, vector<8x32xf32>
    %9 = vector.shape_cast %8 : vector<8x32xf32> to vector<8x1x32xf32>
    %c0_8 = arith.constant 0 : index
    %c0_9 = arith.constant 0 : index
    %10 = vector.load %arg3[%c0_8, %c0_9] : memref<16x32xf32, #tpu.memory_space<vmem>>, vector<16x32xf32>
    %11 = vector.shape_cast %10 : vector<16x32xf32> to vector<1x16x32xf32>
    %12 = vector.broadcast %9 : vector<8x1x32xf32> to vector<8x16x32xf32>
    %13 = vector.broadcast %11 : vector<1x16x32xf32> to vector<8x16x32xf32>
    %14 = arith.addf %12, %13 : vector<8x16x32xf32>
    %cst_10 = arith.constant 0.000000e+00 : f32
    %15 = vector.broadcast %cst_10 : f32 to vector<8x16x32xf32>
    %16 = arith.maximumf %14, %15 : vector<8x16x32xf32>
    %17 = vector.shape_cast %16 : vector<8x16x32xf32> to vector<128x32xf32>
    %c0_11 = arith.constant 0 : index
    %c0_12 = arith.constant 0 : index
    %18 = vector.load %arg6[%c0_11, %c0_12] : memref<32x32xf32, #tpu.memory_space<vmem>>, vector<32x32xf32>
    %cst_13 = arith.constant dense<0.000000e+00> : vector<128x32xf32>
    %19 = tpu.matmul %7, %18, %cst_13 {dimension_numbers = #tpu.dot_dimension_numbers<[1], [0], [0], [1], [0, 0, 1, 1], [], []>} : vector<128x32xf32>, vector<32x32xf32>, vector<128x32xf32> -> vector<128x32xf32>
    %c0_14 = arith.constant 0 : index
    %c0_15 = arith.constant 0 : index
    %20 = vector.load %arg7[%c0_14, %c0_15] : memref<32x32xf32, #tpu.memory_space<vmem>>, vector<32x32xf32>
    %cst_16 = arith.constant dense<0.000000e+00> : vector<128x32xf32>
    %21 = tpu.matmul %17, %20, %cst_16 {dimension_numbers = #tpu.dot_dimension_numbers<[1], [0], [0], [1], [0, 0, 1, 1], [], []>} : vector<128x32xf32>, vector<32x32xf32>, vector<128x32xf32> -> vector<128x32xf32>
    %22 = arith.addf %19, %21 : vector<128x32xf32>
    %c0_17 = arith.constant 0 : index
    %c0_18 = arith.constant 0 : index
    %23 = vector.load %arg8[%c0_17, %c0_18] : memref<1x32xf32, #tpu.memory_space<vmem>>, vector<1x32xf32>
    %24 = vector.broadcast %23 : vector<1x32xf32> to vector<128x32xf32>
    %25 = arith.addf %22, %24 : vector<128x32xf32>
    %cst_19 = arith.constant dense<0.000000e+00> : vector<128xf32>
    %26 = vector.multi_reduction <add>, %25, %cst_19 [1] : vector<128x32xf32> to vector<128xf32>
    %27 = vector.shape_cast %26 : vector<128xf32> to vector<128x1xf32>
    %cst_20 = arith.constant 3.200000e+01 : f32
    %28 = vector.broadcast %cst_20 : f32 to vector<128x1xf32>
    %29 = arith.divf %27, %28 : vector<128x1xf32>
    %30 = vector.broadcast %29 : vector<128x1xf32> to vector<128x32xf32>
    %31 = arith.subf %25, %30 : vector<128x32xf32>
    %32 = arith.mulf %31, %31 : vector<128x32xf32>
    %cst_21 = arith.constant dense<0.000000e+00> : vector<128xf32>
    %33 = vector.multi_reduction <add>, %32, %cst_21 [1] : vector<128x32xf32> to vector<128xf32>
    %34 = vector.shape_cast %33 : vector<128xf32> to vector<128x1xf32>
    %cst_22 = arith.constant 3.200000e+01 : f32
    %35 = vector.broadcast %cst_22 : f32 to vector<128x1xf32>
    %36 = arith.divf %34, %35 : vector<128x1xf32>
    %cst_23 = arith.constant 9.99999974E-6 : f32
    %37 = vector.broadcast %cst_23 : f32 to vector<128x1xf32>
    %38 = arith.addf %36, %37 : vector<128x1xf32>
    %39 = math.rsqrt %38 : vector<128x1xf32>
    %40 = vector.broadcast %39 : vector<128x1xf32> to vector<128x32xf32>
    %41 = arith.mulf %31, %40 : vector<128x32xf32>
    %c0_24 = arith.constant 0 : index
    %c0_25 = arith.constant 0 : index
    %42 = vector.load %arg9[%c0_24, %c0_25] : memref<1x32xf32, #tpu.memory_space<vmem>>, vector<1x32xf32>
    %43 = vector.broadcast %42 : vector<1x32xf32> to vector<128x32xf32>
    %44 = arith.mulf %41, %43 : vector<128x32xf32>
    %c0_26 = arith.constant 0 : index
    %c0_27 = arith.constant 0 : index
    %45 = vector.load %arg10[%c0_26, %c0_27] : memref<1x32xf32, #tpu.memory_space<vmem>>, vector<1x32xf32>
    %46 = vector.broadcast %45 : vector<1x32xf32> to vector<128x32xf32>
    %47 = arith.addf %44, %46 : vector<128x32xf32>
    %c0_28 = arith.constant 0 : index
    %c0_29 = arith.constant 0 : index
    %48 = vector.load %arg11[%c0_28, %c0_29] : memref<128x32xf32, #tpu.memory_space<vmem>>, vector<128x32xf32>
    tpu.vector_store %arg11[%c0_28, %c0_29], %47 {strides = array<i32>} : memref<128x32xf32, #tpu.memory_space<vmem>>, vector<128x32xf32>,
    return
  }
  func.func @transform_0(%arg0: i32) -> (i32, i32) {
    %c0_i32 = arith.constant 0 : i32
    %c0_i32_0 = arith.constant 0 : i32
    return %arg0, %c0_i32 : i32, i32
  }
  func.func @transform_1(%arg0: i32) -> (i32, i32) {
    %c0_i32 = arith.constant 0 : i32
    %c0_i32_0 = arith.constant 0 : i32
    return %arg0, %c0_i32 : i32, i32
  }
  func.func @transform_2(%arg0: i32) -> (i32, i32) {
    %c0_i32 = arith.constant 0 : i32
    %c0_i32_0 = arith.constant 0 : i32
    %c0_i32_1 = arith.constant 0 : i32
    return %c0_i32, %c0_i32_0 : i32, i32
  }
  func.func @transform_3(%arg0: i32) -> (i32, i32) {
    %c0_i32 = arith.constant 0 : i32
    %c0_i32_0 = arith.constant 0 : i32
    %c0_i32_1 = arith.constant 0 : i32
    return %c0_i32, %c0_i32_0 : i32, i32
  }
  func.func @transform_4(%arg0: i32) -> (i32, i32) {
    %c0_i32 = arith.constant 0 : i32
    %c0_i32_0 = arith.constant 0 : i32
    %c0_i32_1 = arith.constant 0 : i32
    return %c0_i32, %c0_i32_0 : i32, i32
  }
  func.func @transform_5(%arg0: i32) -> (i32, i32) {
    %c0_i32 = arith.constant 0 : i32
    %c0_i32_0 = arith.constant 0 : i32
    %c0_i32_1 = arith.constant 0 : i32
    return %c0_i32, %c0_i32_0 : i32, i32
  }
  func.func @transform_6(%arg0: i32) -> (i32, i32) {
    %c0_i32 = arith.constant 0 : i32
    %c0_i32_0 = arith.constant 0 : i32
    %c0_i32_1 = arith.constant 0 : i32
    return %c0_i32, %c0_i32_0 : i32, i32
  }
  func.func @transform_7(%arg0: i32) -> (i32, i32) {
    %c0_i32 = arith.constant 0 : i32
    %c0_i32_0 = arith.constant 0 : i32
    %c0_i32_1 = arith.constant 0 : i32
    return %c0_i32, %c0_i32_0 : i32, i32
  }
  func.func @transform_8(%arg0: i32) -> (i32, i32) {
    %c0_i32 = arith.constant 0 : i32
    %c0_i32_0 = arith.constant 0 : i32
    %c0_i32_1 = arith.constant 0 : i32
    return %c0_i32, %c0_i32_0 : i32, i32
  }
  func.func @transform_9(%arg0: i32) -> (i32, i32) {
    %c0_i32 = arith.constant 0 : i32
    %c0_i32_0 = arith.constant 0 : i32
    %c0_i32_1 = arith.constant 0 : i32
    return %c0_i32, %c0_i32_0 : i32, i32
  }
  func.func @transform_10(%arg0: i32) -> (i32, i32) {
    %c0_i32 = arith.constant 0 : i32
    %c0_i32_0 = arith.constant 0 : i32
    return %arg0, %c0_i32 : i32, i32
  }
}

</mosaic_0001>

<llo_original>
// kernel: init_embedder_2d.1
$region0: #{init_embedder_2d.1}
  #allocation0 [shape = 'u32[]', space=smem, size = 0x4, offset = 0x4, fixed_abs, tag = 'smem constant byte address 0x4 - core index']
  #allocation1 [shape = 'u32[72,128]{1,0:T(1,128)}', space=vmem, size = 0x9000, scoped, tag = 'internal scratch']
  %s0 = inlined_call_operand.vmem [shape: f32[256,4], index: 0, kind: input, shape index: {}]
  %s1 = inlined_call_operand.vmem [shape: f32[16,32], index: 1, kind: input, shape index: {}]
  %s2 = inlined_call_operand.vmem [shape: f32[16,32], index: 2, kind: input, shape index: {}]
  %s3 = inlined_call_operand.vmem [shape: f32[4,32], index: 3, kind: input, shape index: {}]
  %s4 = inlined_call_operand.vmem [shape: f32[1,32], index: 4, kind: input, shape index: {}]
  %s5 = inlined_call_operand.vmem [shape: f32[32,32], index: 5, kind: input, shape index: {}]
  %s6 = inlined_call_operand.vmem [shape: f32[32,32], index: 6, kind: input, shape index: {}]
  %s7 = inlined_call_operand.vmem [shape: f32[1,32], index: 7, kind: input, shape index: {}]
  %s8 = inlined_call_operand.vmem [shape: f32[1,32], index: 8, kind: input, shape index: {}]
  %s9 = inlined_call_operand.vmem [shape: f32[1,32], index: 9, kind: input, shape index: {}]
  %s10 = inlined_call_operand.hbm [shape: f32[256,32], index: 10, kind: output, shape index: {}]
  %s11 = sld [smem:[#allocation0]]
  $region73: #{init_embedder_2d.1} parent=0
    _
  %s13 = ssub.s32 1, %s11
  %s14 = scalar_select 0, %s13, %s11
  $region1: #{init_embedder_2d.1} parent=0
    #allocation2 [shape = 'u8[131072]{0}', space=vmem, size = 0x20000, scoped, tag = 'output window, operand 0']
    #allocation3 [shape = 's32[2]{0}', space=sflag, size = 0x8, scoped, tag = 'scoped memory for init_embedder_2d.1']
    %15 = vsyncpa [#allocation3], 0
    %s16 = scalar_lea.sflag [#allocation3], 1
    %17 = vsyncpa %s16, 0
    loop: start=0, step=1, limit=4
    $region2: #{init_embedder_2d.1} parent=1 // loop_pre_header
      _
    $region3: #{init_embedder_2d.1} parent=1 // loop_header
      %s19 = sphi 0, %s23
      %p20 = scmp.ge.s32.totalorder %s19, 4
      %s29 = sphi 0, %s31
      %s32 = sphi 0, %s29
      %s33 = sphi 0, %s32
      %s49 = sphi 0, %s33
      %s55 = sphi 0, %s57
      %s58 = sphi 0, %s55
      %s59 = sphi 0, %s58
      %s75 = sphi 0, %s59
      %s79 = sphi 0, %s79
      %s81 = sphi 0, %s79
      %s82 = sphi 0, %s81
      %s96 = sphi 0, %s82
      %s100 = sphi 0, %s100
      %s102 = sphi 0, %s100
      %s103 = sphi 0, %s102
      %s117 = sphi 0, %s103
      %s121 = sphi 0, %s121
      %s123 = sphi 0, %s121
      %s124 = sphi 0, %s123
      %s138 = sphi 0, %s124
      %s142 = sphi 0, %s142
      %s144 = sphi 0, %s142
      %s145 = sphi 0, %s144
      %s159 = sphi 0, %s145
      %s163 = sphi 0, %s163
      %s165 = sphi 0, %s163
      %s166 = sphi 0, %s165
      %s180 = sphi 0, %s166
      %s184 = sphi 0, %s184
      %s186 = sphi 0, %s184
      %s187 = sphi 0, %s186
      %s201 = sphi 0, %s187
      %s205 = sphi 0, %s205
      %s207 = sphi 0, %s205
      %s208 = sphi 0, %s207
      %s222 = sphi 0, %s208
      %s226 = sphi 0, %s226
      %s228 = sphi 0, %s226
      %s229 = sphi 0, %s228
      %s243 = sphi 0, %s229
      %s249 = sphi 0, %s251
      %s252 = sphi 0, %s249
      %s253 = sphi 0, %s252
      %s269 = sphi 0, %s253
    $region4: #{init_embedder_2d.1} parent=1 // loop_header_branch
      %22 = sbr.rel (%p20) target = $region8
    $region5: #{init_embedder_2d.1} parent=1 // loop_body
      %s24 = ssub.s32 %s19, 1
      %s25 = ssub.s32 %s19, 2
      %s26 = sadd.s32 %s19, 1
      %s27 = ssub.s32 %s19, %s26
      %p28 = scmp.eq.s32.totalorder %s27, 0
      %s30 = sadd.s32 %s29, 1
      %s31 = scalar_select %p28, %s29, %s30
      %p34 = pneg %p28
      %p35 = scmp.eq.s32.totalorder %s19, 1
      %p36 = por %p34, %p35
      %p37 = scmp.ne.s32.totalorder %s29, %s32
      %p38 = scmp.eq.s32.totalorder %s19, 0
      %p39 = por %p37, %p38
      %p40 = scmp.ne.s32.totalorder %s29, %s32
      %p41 = scmp.eq.s32.totalorder %s24, 1
      %p42 = por %p40, %p41
      %p43 = scmp.ne.s32.totalorder %s32, %s33
      %p44 = scmp.eq.s32.totalorder %s24, 0
      %p45 = por %p43, %p44
      %p46 = scmp.ne.s32.totalorder %s32, %s33
      %p47 = scmp.eq.s32.totalorder %s25, 1
      %p48 = por %p46, %p47
      %p50 = scmp.ne.s32.totalorder %s33, %s49
      %p51 = scmp.eq.s32.totalorder %s25, 0
      %p52 = por %p50, %p51
      %s53 = ssub.s32 %s19, %s26
      %p54 = scmp.eq.s32.totalorder %s53, 0
      %s56 = sadd.s32 %s55, 1
      %s57 = scalar_select %p54, %s55, %s56
      %p60 = pneg %p54
      %p61 = scmp.eq.s32.totalorder %s19, 1
      %p62 = por %p60, %p61
      %p63 = scmp.ne.s32.totalorder %s55, %s58
      %p64 = scmp.eq.s32.totalorder %s19, 0
      %p65 = por %p63, %p64
      %p66 = scmp.ne.s32.totalorder %s55, %s58
      %p67 = scmp.eq.s32.totalorder %s24, 1
      %p68 = por %p66, %p67
      %p69 = scmp.ne.s32.totalorder %s58, %s59
      %p70 = scmp.eq.s32.totalorder %s24, 0
      %p71 = por %p69, %p70
      %p72 = scmp.ne.s32.totalorder %s58, %s59
      %p73 = scmp.eq.s32.totalorder %s25, 1
      %p74 = por %p72, %p73
      %p76 = scmp.ne.s32.totalorder %s59, %s75
      %p77 = scmp.eq.s32.totalorder %s25, 0
      %p78 = por %p76, %p77
      %s80 = sadd.s32 %s79, 1
      %p83 = scmp.eq.s32.totalorder %s19, 1
      %p84 = scmp.ne.s32.totalorder %s79, %s81
      %p85 = scmp.eq.s32.totalorder %s19, 0
      %p86 = por %p84, %p85
      %p87 = scmp.ne.s32.totalorder %s79, %s81
      %p88 = scmp.eq.s32.totalorder %s24, 1
      %p89 = por %p87, %p88
      %p90 = scmp.ne.s32.totalorder %s81, %s82
      %p91 = scmp.eq.s32.totalorder %s24, 0
      %p92 = por %p90, %p91
      %p93 = scmp.ne.s32.totalorder %s81, %s82
      %p94 = scmp.eq.s32.totalorder %s25, 1
      %p95 = por %p93, %p94
      %p97 = scmp.ne.s32.totalorder %s82, %s96
      %p98 = scmp.eq.s32.totalorder %s25, 0
      %p99 = por %p97, %p98
      %s101 = sadd.s32 %s100, 1
      %p104 = scmp.eq.s32.totalorder %s19, 1
      %p105 = scmp.ne.s32.totalorder %s100, %s102
      %p106 = scmp.eq.s32.totalorder %s19, 0
      %p107 = por %p105, %p106
      %p108 = scmp.ne.s32.totalorder %s100, %s102
      %p109 = scmp.eq.s32.totalorder %s24, 1
      %p110 = por %p108, %p109
      %p111 = scmp.ne.s32.totalorder %s102, %s103
      %p112 = scmp.eq.s32.totalorder %s24, 0
      %p113 = por %p111, %p112
      %p114 = scmp.ne.s32.totalorder %s102, %s103
      %p115 = scmp.eq.s32.totalorder %s25, 1
      %p116 = por %p114, %p115
      %p118 = scmp.ne.s32.totalorder %s103, %s117
      %p119 = scmp.eq.s32.totalorder %s25, 0
      %p120 = por %p118, %p119
      %s122 = sadd.s32 %s121, 1
      %p125 = scmp.eq.s32.totalorder %s19, 1
      %p126 = scmp.ne.s32.totalorder %s121, %s123
      %p127 = scmp.eq.s32.totalorder %s19, 0
      %p128 = por %p126, %p127
      %p129 = scmp.ne.s32.totalorder %s121, %s123
      %p130 = scmp.eq.s32.totalorder %s24, 1
      %p131 = por %p129, %p130
      %p132 = scmp.ne.s32.totalorder %s123, %s124
      %p133 = scmp.eq.s32.totalorder %s24, 0
      %p134 = por %p132, %p133
      %p135 = scmp.ne.s32.totalorder %s123, %s124
      %p136 = scmp.eq.s32.totalorder %s25, 1
      %p137 = por %p135, %p136
      %p139 = scmp.ne.s32.totalorder %s124, %s138
      %p140 = scmp.eq.s32.totalorder %s25, 0
      %p141 = por %p139, %p140
      %s143 = sadd.s32 %s142, 1
      %p146 = scmp.eq.s32.totalorder %s19, 1
      %p147 = scmp.ne.s32.totalorder %s142, %s144
      %p148 = scmp.eq.s32.totalorder %s19, 0
      %p149 = por %p147, %p148
      %p150 = scmp.ne.s32.totalorder %s142, %s144
      %p151 = scmp.eq.s32.totalorder %s24, 1
      %p152 = por %p150, %p151
      %p153 = scmp.ne.s32.totalorder %s144, %s145
      %p154 = scmp.eq.s32.totalorder %s24, 0
      %p155 = por %p153, %p154
      %p156 = scmp.ne.s32.totalorder %s144, %s145
      %p157 = scmp.eq.s32.totalorder %s25, 1
      %p158 = por %p156, %p157
      %p160 = scmp.ne.s32.totalorder %s145, %s159
      %p161 = scmp.eq.s32.totalorder %s25, 0
      %p162 = por %p160, %p161
      %s164 = sadd.s32 %s163, 1
      %p167 = scmp.eq.s32.totalorder %s19, 1
      %p168 = scmp.ne.s32.totalorder %s163, %s165
      %p169 = scmp.eq.s32.totalorder %s19, 0
      %p170 = por %p168, %p169
      %p171 = scmp.ne.s32.totalorder %s163, %s165
      %p172 = scmp.eq.s32.totalorder %s24, 1
      %p173 = por %p171, %p172
      %p174 = scmp.ne.s32.totalorder %s165, %s166
      %p175 = scmp.eq.s32.totalorder %s24, 0
      %p176 = por %p174, %p175
      %p177 = scmp.ne.s32.totalorder %s165, %s166
      %p178 = scmp.eq.s32.totalorder %s25, 1
      %p179 = por %p177, %p178
      %p181 = scmp.ne.s32.totalorder %s166, %s180
      %p182 = scmp.eq.s32.totalorder %s25, 0
      %p183 = por %p181, %p182
      %s185 = sadd.s32 %s184, 1
      %p188 = scmp.eq.s32.totalorder %s19, 1
      %p189 = scmp.ne.s32.totalorder %s184, %s186
      %p190 = scmp.eq.s32.totalorder %s19, 0
      %p191 = por %p189, %p190
      %p192 = scmp.ne.s32.totalorder %s184, %s186
      %p193 = scmp.eq.s32.totalorder %s24, 1
      %p194 = por %p192, %p193
      %p195 = scmp.ne.s32.totalorder %s186, %s187
      %p196 = scmp.eq.s32.totalorder %s24, 0
      %p197 = por %p195, %p196
      %p198 = scmp.ne.s32.totalorder %s186, %s187
      %p199 = scmp.eq.s32.totalorder %s25, 1
      %p200 = por %p198, %p199
      %p202 = scmp.ne.s32.totalorder %s187, %s201
      %p203 = scmp.eq.s32.totalorder %s25, 0
      %p204 = por %p202, %p203
      %s206 = sadd.s32 %s205, 1
      %p209 = scmp.eq.s32.totalorder %s19, 1
      %p210 = scmp.ne.s32.totalorder %s205, %s207
      %p211 = scmp.eq.s32.totalorder %s19, 0
      %p212 = por %p210, %p211
      %p213 = scmp.ne.s32.totalorder %s205, %s207
      %p214 = scmp.eq.s32.totalorder %s24, 1
      %p215 = por %p213, %p214
      %p216 = scmp.ne.s32.totalorder %s207, %s208
      %p217 = scmp.eq.s32.totalorder %s24, 0
      %p218 = por %p216, %p217
      %p219 = scmp.ne.s32.totalorder %s207, %s208
      %p220 = scmp.eq.s32.totalorder %s25, 1
      %p221 = por %p219, %p220
      %p223 = scmp.ne.s32.totalorder %s208, %s222
      %p224 = scmp.eq.s32.totalorder %s25, 0
      %p225 = por %p223, %p224
      %s227 = sadd.s32 %s226, 1
      %p230 = scmp.eq.s32.totalorder %s19, 1
      %p231 = scmp.ne.s32.totalorder %s226, %s228
      %p232 = scmp.eq.s32.totalorder %s19, 0
      %p233 = por %p231, %p232
      %p234 = scmp.ne.s32.totalorder %s226, %s228
      %p235 = scmp.eq.s32.totalorder %s24, 1
      %p236 = por %p234, %p235
      %p237 = scmp.ne.s32.totalorder %s228, %s229
      %p238 = scmp.eq.s32.totalorder %s24, 0
      %p239 = por %p237, %p238
      %p240 = scmp.ne.s32.totalorder %s228, %s229
      %p241 = scmp.eq.s32.totalorder %s25, 1
      %p242 = por %p240, %p241
      %p244 = scmp.ne.s32.totalorder %s229, %s243
      %p245 = scmp.eq.s32.totalorder %s25, 0
      %p246 = por %p244, %p245
      %s247 = ssub.s32 %s19, %s26
      %p248 = scmp.eq.s32.totalorder %s247, 0
      %s250 = sadd.s32 %s249, 1
      %s251 = scalar_select %p248, %s249, %s250
      %p254 = pneg %p248
      %p255 = scmp.eq.s32.totalorder %s19, 1
      %p256 = por %p254, %p255
      %p257 = scmp.ne.s32.totalorder %s249, %s252
      %p258 = scmp.eq.s32.totalorder %s19, 0
      %p259 = por %p257, %p258
      %p260 = scmp.ne.s32.totalorder %s249, %s252
      %p261 = scmp.eq.s32.totalorder %s24, 1
      %p262 = por %p260, %p261
      %p263 = scmp.ne.s32.totalorder %s252, %s253
      %p264 = scmp.eq.s32.totalorder %s24, 0
      %p265 = por %p263, %p264
      %p266 = scmp.ne.s32.totalorder %s252, %s253
      %p267 = scmp.eq.s32.totalorder %s25, 1
      %p268 = por %p266, %p267
      %p270 = scmp.ne.s32.totalorder %s253, %s269
      %p271 = scmp.eq.s32.totalorder %s25, 0
      %p272 = por %p270, %p271
      %p273 = scmp.le.s32.totalorder 1, %s19
      %p274 = scmp.lt.s32.totalorder %s19, 3
      %p275 = pnand %p273, %p274
      %p276 = pneg %p275
      // Predicated region
      $region9: #{init_embedder_2d.1} parent=5 // pred_check
        _
      $region10: #{init_embedder_2d.1} parent=5 // pred_check_branch
        %278 = sbr.rel (%p275) target = $region12
      $region11: #{init_embedder_2d.1} parent=5 // pred_region
        %s279 = ssub.s32 %s19, 1
        // Predicated region
        $region13: #{init_embedder_2d.1} parent=11 // pred_check
          %p280 = pneg %p92
        $region14: #{init_embedder_2d.1} parent=11 // pred_check_branch
          %282 = sbr.rel (%p280) target = $region16
        $region15: #{init_embedder_2d.1} parent=11 // pred_region
          _
        $region16: #{init_embedder_2d.1} parent=11 // pred_fallthru
          _
        // Predicated region
        $region17: #{init_embedder_2d.1} parent=11 // pred_check
          %p283 = pneg %p113
        $region18: #{init_embedder_2d.1} parent=11 // pred_check_branch
          %285 = sbr.rel (%p283) target = $region20
        $region19: #{init_embedder_2d.1} parent=11 // pred_region
          _
        $region20: #{init_embedder_2d.1} parent=11 // pred_fallthru
          _
        // Predicated region
        $region21: #{init_embedder_2d.1} parent=11 // pred_check
          %p286 = pneg %p134
        $region22: #{init_embedder_2d.1} parent=11 // pred_check_branch
          %288 = sbr.rel (%p286) target = $region24
        $region23: #{init_embedder_2d.1} parent=11 // pred_region
          _
        $region24: #{init_embedder_2d.1} parent=11 // pred_fallthru
          _
        // Predicated region
        $region25: #{init_embedder_2d.1} parent=11 // pred_check
          %p289 = pneg %p155
        $region26: #{init_embedder_2d.1} parent=11 // pred_check_branch
          %291 = sbr.rel (%p289) target = $region28
        $region27: #{init_embedder_2d.1} parent=11 // pred_region
          _
        $region28: #{init_embedder_2d.1} parent=11 // pred_fallthru
          _
        // Predicated region
        $region29: #{init_embedder_2d.1} parent=11 // pred_check
          %p292 = pneg %p176
        $region30: #{init_embedder_2d.1} parent=11 // pred_check_branch
          %294 = sbr.rel (%p292) target = $region32
        $region31: #{init_embedder_2d.1} parent=11 // pred_region
          _
        $region32: #{init_embedder_2d.1} parent=11 // pred_fallthru
          _
        // Predicated region
        $region33: #{init_embedder_2d.1} parent=11 // pred_check
          %p295 = pneg %p197
        $region34: #{init_embedder_2d.1} parent=11 // pred_check_branch
          %297 = sbr.rel (%p295) target = $region36
        $region35: #{init_embedder_2d.1} parent=11 // pred_region
          _
        $region36: #{init_embedder_2d.1} parent=11 // pred_fallthru
          _
        // Predicated region
        $region37: #{init_embedder_2d.1} parent=11 // pred_check
          %p298 = pneg %p218
        $region38: #{init_embedder_2d.1} parent=11 // pred_check_branch
          %300 = sbr.rel (%p298) target = $region40
        $region39: #{init_embedder_2d.1} parent=11 // pred_region
          _
        $region40: #{init_embedder_2d.1} parent=11 // pred_fallthru
          _
        // Predicated region
        $region41: #{init_embedder_2d.1} parent=11 // pred_check
          %p301 = pneg %p239
        $region42: #{init_embedder_2d.1} parent=11 // pred_check_branch
          %303 = sbr.rel (%p301) target = $region44
        $region43: #{init_embedder_2d.1} parent=11 // pred_region
          _
        $region44: #{init_embedder_2d.1} parent=11 // pred_fallthru
          _
      $region12: #{init_embedder_2d.1} parent=5 // pred_fallthru
        _
      %p304 = scmp.lt.s32.totalorder %s19, 2
      // Predicated region
      $region45: #{init_embedder_2d.1} parent=5 // pred_check
        %p305 = pneg %p304
      $region46: #{init_embedder_2d.1} parent=5 // pred_check_branch
        %307 = sbr.rel (%p305) target = $region48
      $region47: #{init_embedder_2d.1} parent=5 // pred_region
        // Predicated region
        $region49: #{init_embedder_2d.1} parent=47 // pred_check
          %p308 = pneg %p39
        $region50: #{init_embedder_2d.1} parent=47 // pred_check_branch
          %310 = sbr.rel (%p308) target = $region52
        $region51: #{init_embedder_2d.1} parent=47 // pred_region
          %s311 = smul.u32 16, %s19
          %p312 = scmp.lt.s32.totalorder %s311, 31
          %s313 = scalar_select %p312, %s311, 31
          %s314 = smul.addr %s313, 8
          %s315 = scalar_lea.vmem %s0, %s314
          %s316 = smul.u32 16, %s19
        $region52: #{init_embedder_2d.1} parent=47 // pred_fallthru
          _
        // Predicated region
        $region53: #{init_embedder_2d.1} parent=47 // pred_check
          %p317 = pneg %p65
        $region54: #{init_embedder_2d.1} parent=47 // pred_check_branch
          %319 = sbr.rel (%p317) target = $region56
        $region55: #{init_embedder_2d.1} parent=47 // pred_region
          %p320 = scmp.lt.s32.totalorder %s19, 1
          %s321 = scalar_select %p320, %s19, 1
          %s322 = smul.addr %s321, 8
          %s323 = scalar_lea.vmem %s1, %s322
        $region56: #{init_embedder_2d.1} parent=47 // pred_fallthru
          _
      $region48: #{init_embedder_2d.1} parent=5 // pred_fallthru
        _
      %p324 = scmp.le.s32.totalorder 1, %s19
      %p325 = scmp.lt.s32.totalorder %s19, 3
      %p326 = pnand %p324, %p325
      %p327 = pneg %p326
      // Predicated region
      $region57: #{init_embedder_2d.1} parent=5 // pred_check
        _
      $region58: #{init_embedder_2d.1} parent=5 // pred_check_branch
        %329 = sbr.rel (%p326) target = $region60
      $region59: #{init_embedder_2d.1} parent=5 // pred_region
        %s330 = ssub.s32 %s19, 1
        %s331 = smul.u32 16, %s24
        %p332 = scmp.lt.s32.totalorder %s331, 31
        %s333 = scalar_select %p332, %s331, 31
        %s334 = smul.addr %s333, 8
        %s335 = scalar_lea.vmem %s0, %s334
        %p336 = pneg %p45
        %p337 = pneg %p42
        %p338 = scmp.lt.s32.totalorder %s24, 1
        %s339 = scalar_select %p338, %s24, 1
        %s340 = smul.addr %s339, 8
        %s341 = scalar_lea.vmem %s1, %s340
        %p342 = pneg %p71
        %p343 = pneg %p68
        %p344 = pneg %p92
        %p345 = pneg %p89
        %p346 = pneg %p113
        %p347 = pneg %p110
        %p348 = pneg %p134
        %p349 = pneg %p131
        %p350 = pneg %p155
        %p351 = pneg %p152
        %p352 = pneg %p176
        %p353 = pneg %p173
        %p354 = pneg %p197
        %p355 = pneg %p194
        %p356 = pneg %p218
        %p357 = pneg %p215
        %p358 = pneg %p239
        %p359 = pneg %p236
        %p360 = pneg %p265
        %p361 = pneg %p262
        %s362 = sand.u32 %s252, 1
        %s363 = scalar_lea.sflag [#allocation3], %s362
        %s364 = sand.u32 %s252, 1
        %s365 = smul.addr %s364, 128
        %s366 = scalar_lea.vmem [#allocation2], %s365
        %s367 = smul.u32 16, %s24
        %p368 = scmp.lt.s32.totalorder %s367, 31
        %s369 = scalar_select %p368, %s367, 31
        %s370 = smul.addr %s369, 8
        %s371 = scalar_lea.vmem %s0, %s370
        %s372 = smul.u32 16, %s24
        %p373 = scmp.lt.s32.totalorder %s24, 1
        %s374 = scalar_select %p373, %s24, 1
        %s375 = smul.addr %s374, 8
        %s376 = scalar_lea.vmem %s1, %s375
        %s377 = smul.u32 16, %s24
        %v378 = vld [vmem:[%s371] sm:$0xff]
        %v379 = vld [vmem:[%s371 + $0x8] sm:$0xff]
        %v380 = vld [vmem:[%s371 + $0x10] sm:$0xff]
        %v381 = vld [vmem:[%s371 + $0x18] sm:$0xff]
        %v382 = vld [vmem:[%s371 + $0x20] sm:$0xff]
        %v383 = vld [vmem:[%s371 + $0x28] sm:$0xff]
        %v384 = vld [vmem:[%s371 + $0x30] sm:$0xff]
        %v385 = vld [vmem:[%s371 + $0x38] sm:$0xff]
        %v386 = vld [vmem:[%s371 + $0x40] sm:$0xff]
        %v387 = vld [vmem:[%s371 + $0x48] sm:$0xff]
        %v388 = vld [vmem:[%s371 + $0x50] sm:$0xff]
        %v389 = vld [vmem:[%s371 + $0x58] sm:$0xff]
        %v390 = vld [vmem:[%s371 + $0x60] sm:$0xff]
        %v391 = vld [vmem:[%s371 + $0x68] sm:$0xff]
        %v392 = vld [vmem:[%s371 + $0x70] sm:$0xff]
        %v393 = vld [vmem:[%s371 + $0x78] sm:$0xff]
        %v394 = vld [vmem:[%s3] sm:$0xf]
        %v395 = vld [vmem:[%s4] sm:$0x1]
        %v397 = vperm.slane %v395, 0
        %vm399 = vcmask 31744
        %v401 = vsel %vm399, %v378, 0
        %v404 = vsel %vm399, %v379, 0
        %v407 = vsel %vm399, %v380, 0
        %v410 = vsel %vm399, %v381, 0
        %v413 = vsel %vm399, %v382, 0
        %v416 = vsel %vm399, %v383, 0
        %v419 = vsel %vm399, %v384, 0
        %v422 = vsel %vm399, %v385, 0
        %v425 = vsel %vm399, %v386, 0
        %v428 = vsel %vm399, %v387, 0
        %v431 = vsel %vm399, %v388, 0
        %v434 = vsel %vm399, %v389, 0
        %v437 = vsel %vm399, %v390, 0
        %v440 = vsel %vm399, %v391, 0
        %v443 = vsel %vm399, %v392, 0
        %v446 = vsel %vm399, %v393, 0
        %vm448 = vcmask 1043456
        %v450 = vsel %vm448, %v394, 0
        %452 = vmatpush.msra.mxu0 0.0
        %453 = vmatpush.msra.mxu0 0.0
        %454 = vmatpush.msra.mxu0 0.0
        %455 = vmatpush.msra.mxu0 0.0
        %456 = vmatpush.msra.mxu0 0.0
        %457 = vmatpush.msra.mxu0 0.0
        %458 = vmatpush.msra.mxu0 0.0
        %459 = vmatpush.msra.mxu0 0.0
        %460 = vmatpush.msra.mxu0 0.0
        %461 = vmatpush.msra.mxu0 0.0
        %462 = vmatpush.msra.mxu0 0.0
        %463 = vmatpush.msra.mxu0 0.0
        %464 = vmatpush.msra.mxu0 0.0
        %465 = vmatpush.msra.mxu0 0.0
        %466 = vmatpush.msra.mxu0 0.0
        %467 = vmatpush.msra.mxu0 %v450
        %468 = vmatmul.f32.gmra.mxu0 %v401
        %v469 = vpop.f32.mrf.mxu0
        %v470 = vadd.f32 %v397, %v469
        %471 = vmatmul.f32.gmra.mxu0 %v404
        %v472 = vpop.f32.mrf.mxu0
        %v473 = vadd.f32 %v397, %v472
        %474 = vmatmul.f32.gmra.mxu0 %v407
        %v475 = vpop.f32.mrf.mxu0
        %v476 = vadd.f32 %v397, %v475
        %477 = vmatmul.f32.gmra.mxu0 %v410
        %v478 = vpop.f32.mrf.mxu0
        %v479 = vadd.f32 %v397, %v478
        %480 = vmatmul.f32.gmra.mxu0 %v413
        %v481 = vpop.f32.mrf.mxu0
        %v482 = vadd.f32 %v397, %v481
        %483 = vmatmul.f32.gmra.mxu0 %v416
        %v484 = vpop.f32.mrf.mxu0
        %v485 = vadd.f32 %v397, %v484
        %486 = vmatmul.f32.gmra.mxu0 %v419
        %v487 = vpop.f32.mrf.mxu0
        %v488 = vadd.f32 %v397, %v487
        %489 = vmatmul.f32.gmra.mxu0 %v422
        %v490 = vpop.f32.mrf.mxu0
        %v491 = vadd.f32 %v397, %v490
        %492 = vmatmul.f32.gmra.mxu0 %v425
        %v493 = vpop.f32.mrf.mxu0
        %v494 = vadd.f32 %v397, %v493
        %495 = vmatmul.f32.gmra.mxu0 %v428
        %v496 = vpop.f32.mrf.mxu0
        %v497 = vadd.f32 %v397, %v496
        %498 = vmatmul.f32.gmra.mxu0 %v431
        %v499 = vpop.f32.mrf.mxu0
        %v500 = vadd.f32 %v397, %v499
        %501 = vmatmul.f32.gmra.mxu0 %v434
        %v502 = vpop.f32.mrf.mxu0
        %v503 = vadd.f32 %v397, %v502
        %504 = vmatmul.f32.gmra.mxu0 %v437
        %v505 = vpop.f32.mrf.mxu0
        %v506 = vadd.f32 %v397, %v505
        %507 = vmatmul.f32.gmra.mxu0 %v440
        %v508 = vpop.f32.mrf.mxu0
        %v509 = vadd.f32 %v397, %v508
        %510 = vmatmul.f32.gmra.mxu0 %v443
        %v511 = vpop.f32.mrf.mxu0
        %v512 = vadd.f32 %v397, %v511
        %513 = vmatmul.f32.gmra.mxu0 %v446
        %v514 = vpop.f32.mrf.mxu0
        %v515 = vadd.f32 %v397, %v514
        %516 = vdwg.mxu0
        %v517 = vmax.f32 %v470, 0.0
        %v518 = vmax.f32 %v473, 0.0
        %v519 = vmax.f32 %v476, 0.0
        %v520 = vmax.f32 %v479, 0.0
        %v521 = vmax.f32 %v482, 0.0
        %v522 = vmax.f32 %v485, 0.0
        %v523 = vmax.f32 %v488, 0.0
        %v524 = vmax.f32 %v491, 0.0
        %v525 = vmax.f32 %v494, 0.0
        %v526 = vmax.f32 %v497, 0.0
        %v527 = vmax.f32 %v500, 0.0
        %v528 = vmax.f32 %v503, 0.0
        %v529 = vmax.f32 %v506, 0.0
        %v530 = vmax.f32 %v509, 0.0
        %v531 = vmax.f32 %v512, 0.0
        %v532 = vmax.f32 %v515, 0.0
        %v533 = vld [vmem:[%s376] sm:$0xff]
        %v535 = vrot.slane %v533, 1
        %v536 = vrot.slane %v533, 2
        %v537 = vrot.slane %v533, 3
        %v538 = vrot.slane %v533, 4
        %v539 = vrot.slane %v533, 5
        %v540 = vrot.slane %v533, 6
        %v541 = vrot.slane %v533, 7
        %v542 = vld [vmem:[%s2] sm:$0xff]
        %v543 = vld [vmem:[%s2 + $0x8] sm:$0xff]
        %v544 = vperm.slane %v533, 0
        %v545 = vperm.slane %v535, 0
        %v546 = vperm.slane %v536, 0
        %v547 = vperm.slane %v537, 0
        %v548 = vperm.slane %v538, 0
        %v549 = vperm.slane %v539, 0
        %v550 = vperm.slane %v540, 0
        %v551 = vperm.slane %v541, 0
        %v560 = vadd.f32 %v544, %v542
        %v561 = vadd.f32 %v544, %v543
        %v562 = vadd.f32 %v545, %v542
        %v563 = vadd.f32 %v545, %v543
        %v564 = vadd.f32 %v546, %v542
        %v565 = vadd.f32 %v546, %v543
        %v566 = vadd.f32 %v547, %v542
        %v567 = vadd.f32 %v547, %v543
        %v568 = vadd.f32 %v548, %v542
        %v569 = vadd.f32 %v548, %v543
        %v570 = vadd.f32 %v549, %v542
        %v571 = vadd.f32 %v549, %v543
        %v572 = vadd.f32 %v550, %v542
        %v573 = vadd.f32 %v550, %v543
        %v574 = vadd.f32 %v551, %v542
        %v575 = vadd.f32 %v551, %v543
        %v576 = vmax.f32 %v560, 0.0
        %v577 = vmax.f32 %v561, 0.0
        %v578 = vmax.f32 %v562, 0.0
        %v579 = vmax.f32 %v563, 0.0
        %v580 = vmax.f32 %v564, 0.0
        %v581 = vmax.f32 %v565, 0.0
        %v582 = vmax.f32 %v566, 0.0
        %v583 = vmax.f32 %v567, 0.0
        %v584 = vmax.f32 %v568, 0.0
        %v585 = vmax.f32 %v569, 0.0
        %v586 = vmax.f32 %v570, 0.0
        %v587 = vmax.f32 %v571, 0.0
        %v588 = vmax.f32 %v572, 0.0
        %v589 = vmax.f32 %v573, 0.0
        %v590 = vmax.f32 %v574, 0.0
        %v591 = vmax.f32 %v575, 0.0
        %v592 = vld [vmem:[%s5] sm:$0xff]
        %v593 = vld [vmem:[%s5 + $0x8] sm:$0xff]
        %v594 = vld [vmem:[%s5 + $0x10] sm:$0xff]
        %v595 = vld [vmem:[%s5 + $0x18] sm:$0xff]
        %v596 = vld [vmem:[%s6] sm:$0xff]
        %v597 = vld [vmem:[%s6 + $0x8] sm:$0xff]
        %v598 = vld [vmem:[%s6 + $0x10] sm:$0xff]
        %v599 = vld [vmem:[%s6 + $0x18] sm:$0xff]
        %vm600 = vcmask 261120
        %v602 = vsel %vm600, %v576, 0
        %v605 = vsel %vm600, %v577, 0
        %v608 = vsel %vm600, %v578, 0
        %v611 = vsel %vm600, %v579, 0
        %v614 = vsel %vm600, %v580, 0
        %v617 = vsel %vm600, %v581, 0
        %v620 = vsel %vm600, %v582, 0
        %v623 = vsel %vm600, %v583, 0
        %v626 = vsel %vm600, %v584, 0
        %v629 = vsel %vm600, %v585, 0
        %v632 = vsel %vm600, %v586, 0
        %v635 = vsel %vm600, %v587, 0
        %v638 = vsel %vm600, %v588, 0
        %v641 = vsel %vm600, %v589, 0
        %v644 = vsel %vm600, %v590, 0
        %v647 = vsel %vm600, %v591, 0
        %649 = vmatpush.msra.mxu0 0.0
        %650 = vmatpush.msra.mxu0 0.0
        %651 = vmatpush.msra.mxu0 0.0
        %652 = vmatpush.msra.mxu0 0.0
        %653 = vmatpush.msra.mxu0 0.0
        %654 = vmatpush.msra.mxu0 0.0
        %655 = vmatpush.msra.mxu0 0.0
        %656 = vmatpush.msra.mxu0 0.0
        %657 = vmatpush.msra.mxu0 0.0
        %658 = vmatpush.msra.mxu0 0.0
        %659 = vmatpush.msra.mxu0 0.0
        %660 = vmatpush.msra.mxu0 0.0
        %661 = vmatpush.msra.mxu0 %v599
        %662 = vmatpush.msra.mxu0 %v598
        %663 = vmatpush.msra.mxu0 %v597
        %664 = vmatpush.msra.mxu0 %v596
        %665 = vmatmul.f32.gmra.mxu0 %v602
        %v666 = vpop.f32.mrf.mxu0
        %v667 = vadd.f32 0.0, %v666
        %668 = vmatmul.f32.gmra.mxu0 %v605
        %v669 = vpop.f32.mrf.mxu0
        %v670 = vadd.f32 0.0, %v669
        %671 = vmatmul.f32.gmra.mxu0 %v608
        %v672 = vpop.f32.mrf.mxu0
        %v673 = vadd.f32 0.0, %v672
        %674 = vmatmul.f32.gmra.mxu0 %v611
        %v675 = vpop.f32.mrf.mxu0
        %v676 = vadd.f32 0.0, %v675
        %677 = vmatmul.f32.gmra.mxu0 %v614
        %v678 = vpop.f32.mrf.mxu0
        %v679 = vadd.f32 0.0, %v678
        %680 = vmatmul.f32.gmra.mxu0 %v617
        %v681 = vpop.f32.mrf.mxu0
        %v682 = vadd.f32 0.0, %v681
        %683 = vmatmul.f32.gmra.mxu0 %v620
        %v684 = vpop.f32.mrf.mxu0
        %v685 = vadd.f32 0.0, %v684
        %686 = vmatmul.f32.gmra.mxu0 %v623
        %v687 = vpop.f32.mrf.mxu0
        %v688 = vadd.f32 0.0, %v687
        %689 = vmatmul.f32.gmra.mxu0 %v626
        %v690 = vpop.f32.mrf.mxu0
        %v691 = vadd.f32 0.0, %v690
        %692 = vmatmul.f32.gmra.mxu0 %v629
        %v693 = vpop.f32.mrf.mxu0
        %v694 = vadd.f32 0.0, %v693
        %695 = vmatmul.f32.gmra.mxu0 %v632
        %v696 = vpop.f32.mrf.mxu0
        %v697 = vadd.f32 0.0, %v696
        %698 = vmatmul.f32.gmra.mxu0 %v635
        %v699 = vpop.f32.mrf.mxu0
        %v700 = vadd.f32 0.0, %v699
        %701 = vmatmul.f32.gmra.mxu0 %v638
        %v702 = vpop.f32.mrf.mxu0
        %v703 = vadd.f32 0.0, %v702
        %704 = vmatmul.f32.gmra.mxu0 %v641
        %v705 = vpop.f32.mrf.mxu0
        %v706 = vadd.f32 0.0, %v705
        %707 = vmatmul.f32.gmra.mxu0 %v644
        %v708 = vpop.f32.mrf.mxu0
        %v709 = vadd.f32 0.0, %v708
        %710 = vmatmul.f32.gmra.mxu0 %v647
        %v711 = vpop.f32.mrf.mxu0
        %v712 = vadd.f32 0.0, %v711
        %713 = vdwg.mxu0
        %v715 = vsel %vm600, %v517, 0
        %v718 = vsel %vm600, %v518, 0
        %v721 = vsel %vm600, %v519, 0
        %v724 = vsel %vm600, %v520, 0
        %v727 = vsel %vm600, %v521, 0
        %v730 = vsel %vm600, %v522, 0
        %v733 = vsel %vm600, %v523, 0
        %v736 = vsel %vm600, %v524, 0
        %v739 = vsel %vm600, %v525, 0
        %v742 = vsel %vm600, %v526, 0
        %v745 = vsel %vm600, %v527, 0
        %v748 = vsel %vm600, %v528, 0
        %v751 = vsel %vm600, %v529, 0
        %v754 = vsel %vm600, %v530, 0
        %v757 = vsel %vm600, %v531, 0
        %v760 = vsel %vm600, %v532, 0
        %762 = vmatpush.msra.mxu0 0.0
        %763 = vmatpush.msra.mxu0 0.0
        %764 = vmatpush.msra.mxu0 0.0
        %765 = vmatpush.msra.mxu0 0.0
        %766 = vmatpush.msra.mxu0 0.0
        %767 = vmatpush.msra.mxu0 0.0
        %768 = vmatpush.msra.mxu0 0.0
        %769 = vmatpush.msra.mxu0 0.0
        %770 = vmatpush.msra.mxu0 0.0
        %771 = vmatpush.msra.mxu0 0.0
        %772 = vmatpush.msra.mxu0 0.0
        %773 = vmatpush.msra.mxu0 0.0
        %774 = vmatpush.msra.mxu0 %v595
        %775 = vmatpush.msra.mxu0 %v594
        %776 = vmatpush.msra.mxu0 %v593
        %777 = vmatpush.msra.mxu0 %v592
        %778 = vmatmul.f32.gmra.mxu0 %v715
        %v779 = vpop.f32.mrf.mxu0
        %v780 = vadd.f32 %v667, %v779
        %781 = vmatmul.f32.gmra.mxu0 %v718
        %v782 = vpop.f32.mrf.mxu0
        %v783 = vadd.f32 %v670, %v782
        %784 = vmatmul.f32.gmra.mxu0 %v721
        %v785 = vpop.f32.mrf.mxu0
        %v786 = vadd.f32 %v673, %v785
        %787 = vmatmul.f32.gmra.mxu0 %v724
        %v788 = vpop.f32.mrf.mxu0
        %v789 = vadd.f32 %v676, %v788
        %790 = vmatmul.f32.gmra.mxu0 %v727
        %v791 = vpop.f32.mrf.mxu0
        %v792 = vadd.f32 %v679, %v791
        %793 = vmatmul.f32.gmra.mxu0 %v730
        %v794 = vpop.f32.mrf.mxu0
        %v795 = vadd.f32 %v682, %v794
        %796 = vmatmul.f32.gmra.mxu0 %v733
        %v797 = vpop.f32.mrf.mxu0
        %v798 = vadd.f32 %v685, %v797
        %799 = vmatmul.f32.gmra.mxu0 %v736
        %v800 = vpop.f32.mrf.mxu0
        %v801 = vadd.f32 %v688, %v800
        %802 = vmatmul.f32.gmra.mxu0 %v739
        %v803 = vpop.f32.mrf.mxu0
        %v804 = vadd.f32 %v691, %v803
        %805 = vmatmul.f32.gmra.mxu0 %v742
        %v806 = vpop.f32.mrf.mxu0
        %v807 = vadd.f32 %v694, %v806
        %808 = vmatmul.f32.gmra.mxu0 %v745
        %v809 = vpop.f32.mrf.mxu0
        %v810 = vadd.f32 %v697, %v809
        %811 = vmatmul.f32.gmra.mxu0 %v748
        %v812 = vpop.f32.mrf.mxu0
        %v813 = vadd.f32 %v700, %v812
        %814 = vmatmul.f32.gmra.mxu0 %v751
        %v815 = vpop.f32.mrf.mxu0
        %v816 = vadd.f32 %v703, %v815
        %817 = vmatmul.f32.gmra.mxu0 %v754
        %v818 = vpop.f32.mrf.mxu0
        %v819 = vadd.f32 %v706, %v818
        %820 = vmatmul.f32.gmra.mxu0 %v757
        %v821 = vpop.f32.mrf.mxu0
        %v822 = vadd.f32 %v709, %v821
        %823 = vmatmul.f32.gmra.mxu0 %v760
        %v824 = vpop.f32.mrf.mxu0
        %v825 = vadd.f32 %v712, %v824
        %826 = vdwg.mxu0
        %v827 = vld [vmem:[%s7] sm:$0x1]
        %v829 = vperm.slane %v827, 0
        %v831 = vadd.f32 %v780, %v829
        %v832 = vadd.f32 %v783, %v829
        %v833 = vadd.f32 %v786, %v829
        %v834 = vadd.f32 %v789, %v829
        %v835 = vadd.f32 %v792, %v829
        %v836 = vadd.f32 %v795, %v829
        %v837 = vadd.f32 %v798, %v829
        %v838 = vadd.f32 %v801, %v829
        %v839 = vadd.f32 %v804, %v829
        %v840 = vadd.f32 %v807, %v829
        %v841 = vadd.f32 %v810, %v829
        %v842 = vadd.f32 %v813, %v829
        %v843 = vadd.f32 %v816, %v829
        %v844 = vadd.f32 %v819, %v829
        %v845 = vadd.f32 %v822, %v829
        %v846 = vadd.f32 %v825, %v829
        %v847 = vsel %vm600, %v831, 0.0
        %848 = vadd.xlane.f32.xlu0 %v847
        %v849 = vpop.xlane.xlu0 %848
        %v850 = vsel %vm600, %v832, 0.0
        %851 = vadd.xlane.f32.xlu0 %v850
        %v852 = vpop.xlane.xlu0 %851
        %v853 = vsel %vm600, %v833, 0.0
        %854 = vadd.xlane.f32.xlu0 %v853
        %v855 = vpop.xlane.xlu0 %854
        %v856 = vsel %vm600, %v834, 0.0
        %857 = vadd.xlane.f32.xlu0 %v856
        %v858 = vpop.xlane.xlu0 %857
        %v859 = vsel %vm600, %v835, 0.0
        %860 = vadd.xlane.f32.xlu0 %v859
        %v861 = vpop.xlane.xlu0 %860
        %v862 = vsel %vm600, %v836, 0.0
        %863 = vadd.xlane.f32.xlu0 %v862
        %v864 = vpop.xlane.xlu0 %863
        %v865 = vsel %vm600, %v837, 0.0
        %866 = vadd.xlane.f32.xlu0 %v865
        %v867 = vpop.xlane.xlu0 %866
        %v868 = vsel %vm600, %v838, 0.0
        %869 = vadd.xlane.f32.xlu0 %v868
        %v870 = vpop.xlane.xlu0 %869
        %v871 = vsel %vm600, %v839, 0.0
        %872 = vadd.xlane.f32.xlu0 %v871
        %v873 = vpop.xlane.xlu0 %872
        %v874 = vsel %vm600, %v840, 0.0
        %875 = vadd.xlane.f32.xlu0 %v874
        %v876 = vpop.xlane.xlu0 %875
        %v877 = vsel %vm600, %v841, 0.0
        %878 = vadd.xlane.f32.xlu0 %v877
        %v879 = vpop.xlane.xlu0 %878
        %v880 = vsel %vm600, %v842, 0.0
        %881 = vadd.xlane.f32.xlu0 %v880
        %v882 = vpop.xlane.xlu0 %881
        %v883 = vsel %vm600, %v843, 0.0
        %884 = vadd.xlane.f32.xlu0 %v883
        %v885 = vpop.xlane.xlu0 %884
        %v886 = vsel %vm600, %v844, 0.0
        %887 = vadd.xlane.f32.xlu0 %v886
        %v888 = vpop.xlane.xlu0 %887
        %v889 = vsel %vm600, %v845, 0.0
        %890 = vadd.xlane.f32.xlu0 %v889
        %v891 = vpop.xlane.xlu0 %890
        %v892 = vsel %vm600, %v846, 0.0
        %893 = vadd.xlane.f32.xlu0 %v892
        %v894 = vpop.xlane.xlu0 %893
        %v895 = vrcp.pop 32.0
        %v896 = vmul.f32 32.0, %v895
        %v897 = vsub.f32 1.0, %v896
        %v898 = vmul.f32 %v895, %v897
        %v899 = vadd.f32 %v895, %v898
        %vm900 = vweird.f32 %v895
        %v901 = vsel %vm900, %v895, %v899
        %v902 = vmul.f32 %v849, %v901
        %v903 = vmul.f32 %v852, %v901
        %v904 = vmul.f32 %v855, %v901
        %v905 = vmul.f32 %v858, %v901
        %v906 = vmul.f32 %v861, %v901
        %v907 = vmul.f32 %v864, %v901
        %v908 = vmul.f32 %v867, %v901
        %v909 = vmul.f32 %v870, %v901
        %v910 = vmul.f32 %v873, %v901
        %v911 = vmul.f32 %v876, %v901
        %v912 = vmul.f32 %v879, %v901
        %v913 = vmul.f32 %v882, %v901
        %v914 = vmul.f32 %v885, %v901
        %v915 = vmul.f32 %v888, %v901
        %v916 = vmul.f32 %v891, %v901
        %v917 = vmul.f32 %v894, %v901
        %v918 = vsub.f32 %v831, %v902
        %v919 = vsub.f32 %v832, %v903
        %v920 = vsub.f32 %v833, %v904
        %v921 = vsub.f32 %v834, %v905
        %v922 = vsub.f32 %v835, %v906
        %v923 = vsub.f32 %v836, %v907
        %v924 = vsub.f32 %v837, %v908
        %v925 = vsub.f32 %v838, %v909
        %v926 = vsub.f32 %v839, %v910
        %v927 = vsub.f32 %v840, %v911
        %v928 = vsub.f32 %v841, %v912
        %v929 = vsub.f32 %v842, %v913
        %v930 = vsub.f32 %v843, %v914
        %v931 = vsub.f32 %v844, %v915
        %v932 = vsub.f32 %v845, %v916
        %v933 = vsub.f32 %v846, %v917
        %v934 = vmul.f32 %v918, %v918
        %v935 = vmul.f32 %v919, %v919
        %v936 = vmul.f32 %v920, %v920
        %v937 = vmul.f32 %v921, %v921
        %v938 = vmul.f32 %v922, %v922
        %v939 = vmul.f32 %v923, %v923
        %v940 = vmul.f32 %v924, %v924
        %v941 = vmul.f32 %v925, %v925
        %v942 = vmul.f32 %v926, %v926
        %v943 = vmul.f32 %v927, %v927
        %v944 = vmul.f32 %v928, %v928
        %v945 = vmul.f32 %v929, %v929
        %v946 = vmul.f32 %v930, %v930
        %v947 = vmul.f32 %v931, %v931
        %v948 = vmul.f32 %v932, %v932
        %v949 = vmul.f32 %v933, %v933
        %v950 = vsel %vm600, %v934, 0.0
        %951 = vadd.xlane.f32.xlu0 %v950
        %v952 = vpop.xlane.xlu0 %951
        %v953 = vsel %vm600, %v935, 0.0
        %954 = vadd.xlane.f32.xlu0 %v953
        %v955 = vpop.xlane.xlu0 %954
        %v956 = vsel %vm600, %v936, 0.0
        %957 = vadd.xlane.f32.xlu0 %v956
        %v958 = vpop.xlane.xlu0 %957
        %v959 = vsel %vm600, %v937, 0.0
        %960 = vadd.xlane.f32.xlu0 %v959
        %v961 = vpop.xlane.xlu0 %960
        %v962 = vsel %vm600, %v938, 0.0
        %963 = vadd.xlane.f32.xlu0 %v962
        %v964 = vpop.xlane.xlu0 %963
        %v965 = vsel %vm600, %v939, 0.0
        %966 = vadd.xlane.f32.xlu0 %v965
        %v967 = vpop.xlane.xlu0 %966
        %v968 = vsel %vm600, %v940, 0.0
        %969 = vadd.xlane.f32.xlu0 %v968
        %v970 = vpop.xlane.xlu0 %969
        %v971 = vsel %vm600, %v941, 0.0
        %972 = vadd.xlane.f32.xlu0 %v971
        %v973 = vpop.xlane.xlu0 %972
        %v974 = vsel %vm600, %v942, 0.0
        %975 = vadd.xlane.f32.xlu0 %v974
        %v976 = vpop.xlane.xlu0 %975
        %v977 = vsel %vm600, %v943, 0.0
        %978 = vadd.xlane.f32.xlu0 %v977
        %v979 = vpop.xlane.xlu0 %978
        %v980 = vsel %vm600, %v944, 0.0
        %981 = vadd.xlane.f32.xlu0 %v980
        %v982 = vpop.xlane.xlu0 %981
        %v983 = vsel %vm600, %v945, 0.0
        %984 = vadd.xlane.f32.xlu0 %v983
        %v985 = vpop.xlane.xlu0 %984
        %v986 = vsel %vm600, %v946, 0.0
        %987 = vadd.xlane.f32.xlu0 %v986
        %v988 = vpop.xlane.xlu0 %987
        %v989 = vsel %vm600, %v947, 0.0
        %990 = vadd.xlane.f32.xlu0 %v989
        %v991 = vpop.xlane.xlu0 %990
        %v992 = vsel %vm600, %v948, 0.0
        %993 = vadd.xlane.f32.xlu0 %v992
        %v994 = vpop.xlane.xlu0 %993
        %v995 = vsel %vm600, %v949, 0.0
        %996 = vadd.xlane.f32.xlu0 %v995
        %v997 = vpop.xlane.xlu0 %996
        %v998 = vmul.f32 %v952, %v901
        %v999 = vmul.f32 %v955, %v901
        %v1000 = vmul.f32 %v958, %v901
        %v1001 = vmul.f32 %v961, %v901
        %v1002 = vmul.f32 %v964, %v901
        %v1003 = vmul.f32 %v967, %v901
        %v1004 = vmul.f32 %v970, %v901
        %v1005 = vmul.f32 %v973, %v901
        %v1006 = vmul.f32 %v976, %v901
        %v1007 = vmul.f32 %v979, %v901
        %v1008 = vmul.f32 %v982, %v901
        %v1009 = vmul.f32 %v985, %v901
        %v1010 = vmul.f32 %v988, %v901
        %v1011 = vmul.f32 %v991, %v901
        %v1012 = vmul.f32 %v994, %v901
        %v1013 = vmul.f32 %v997, %v901
        %v1014 = vadd.f32 %v998, 1e-05
        %v1015 = vadd.f32 %v999, 1e-05
        %v1016 = vadd.f32 %v1000, 1e-05
        %v1017 = vadd.f32 %v1001, 1e-05
        %v1018 = vadd.f32 %v1002, 1e-05
        %v1019 = vadd.f32 %v1003, 1e-05
        %v1020 = vadd.f32 %v1004, 1e-05
        %v1021 = vadd.f32 %v1005, 1e-05
        %v1022 = vadd.f32 %v1006, 1e-05
        %v1023 = vadd.f32 %v1007, 1e-05
        %v1024 = vadd.f32 %v1008, 1e-05
        %v1025 = vadd.f32 %v1009, 1e-05
        %v1026 = vadd.f32 %v1010, 1e-05
        %v1027 = vadd.f32 %v1011, 1e-05
        %v1028 = vadd.f32 %v1012, 1e-05
        %v1029 = vadd.f32 %v1013, 1e-05
        %v1030 = vrsqrt.pop %v1014
        %v1031 = vmul.f32 %v1030, %v1014
        %v1032 = vmul.f32 %v1031, %v1030
        %v1033 = vmul.f32 0.5, %v1032
        %v1034 = vsub.f32 1.5, %v1033
        %v1035 = vmul.f32 %v1030, %v1034
        %vm1036 = vweird.f32 %v1014
        %vm1037 = vweird.f32 %v1030
        %vm1038 = vmor %vm1036, %vm1037
        %v1039 = vsel %vm1038, %v1030, %v1035
        %v1040 = vrsqrt.pop %v1015
        %v1041 = vmul.f32 %v1040, %v1015
        %v1042 = vmul.f32 %v1041, %v1040
        %v1043 = vmul.f32 0.5, %v1042
        %v1044 = vsub.f32 1.5, %v1043
        %v1045 = vmul.f32 %v1040, %v1044
        %vm1046 = vweird.f32 %v1015
        %vm1047 = vweird.f32 %v1040
        %vm1048 = vmor %vm1046, %vm1047
        %v1049 = vsel %vm1048, %v1040, %v1045
        %v1050 = vrsqrt.pop %v1016
        %v1051 = vmul.f32 %v1050, %v1016
        %v1052 = vmul.f32 %v1051, %v1050
        %v1053 = vmul.f32 0.5, %v1052
        %v1054 = vsub.f32 1.5, %v1053
        %v1055 = vmul.f32 %v1050, %v1054
        %vm1056 = vweird.f32 %v1016
        %vm1057 = vweird.f32 %v1050
        %vm1058 = vmor %vm1056, %vm1057
        %v1059 = vsel %vm1058, %v1050, %v1055
        %v1060 = vrsqrt.pop %v1017
        %v1061 = vmul.f32 %v1060, %v1017
        %v1062 = vmul.f32 %v1061, %v1060
        %v1063 = vmul.f32 0.5, %v1062
        %v1064 = vsub.f32 1.5, %v1063
        %v1065 = vmul.f32 %v1060, %v1064
        %vm1066 = vweird.f32 %v1017
        %vm1067 = vweird.f32 %v1060
        %vm1068 = vmor %vm1066, %vm1067
        %v1069 = vsel %vm1068, %v1060, %v1065
        %v1070 = vrsqrt.pop %v1018
        %v1071 = vmul.f32 %v1070, %v1018
        %v1072 = vmul.f32 %v1071, %v1070
        %v1073 = vmul.f32 0.5, %v1072
        %v1074 = vsub.f32 1.5, %v1073
        %v1075 = vmul.f32 %v1070, %v1074
        %vm1076 = vweird.f32 %v1018
        %vm1077 = vweird.f32 %v1070
        %vm1078 = vmor %vm1076, %vm1077
        %v1079 = vsel %vm1078, %v1070, %v1075
        %v1080 = vrsqrt.pop %v1019
        %v1081 = vmul.f32 %v1080, %v1019
        %v1082 = vmul.f32 %v1081, %v1080
        %v1083 = vmul.f32 0.5, %v1082
        %v1084 = vsub.f32 1.5, %v1083
        %v1085 = vmul.f32 %v1080, %v1084
        %vm1086 = vweird.f32 %v1019
        %vm1087 = vweird.f32 %v1080
        %vm1088 = vmor %vm1086, %vm1087
        %v1089 = vsel %vm1088, %v1080, %v1085
        %v1090 = vrsqrt.pop %v1020
        %v1091 = vmul.f32 %v1090, %v1020
        %v1092 = vmul.f32 %v1091, %v1090
        %v1093 = vmul.f32 0.5, %v1092
        %v1094 = vsub.f32 1.5, %v1093
        %v1095 = vmul.f32 %v1090, %v1094
        %vm1096 = vweird.f32 %v1020
        %vm1097 = vweird.f32 %v1090
        %vm1098 = vmor %vm1096, %vm1097
        %v1099 = vsel %vm1098, %v1090, %v1095
        %v1100 = vrsqrt.pop %v1021
        %v1101 = vmul.f32 %v1100, %v1021
        %v1102 = vmul.f32 %v1101, %v1100
        %v1103 = vmul.f32 0.5, %v1102
        %v1104 = vsub.f32 1.5, %v1103
        %v1105 = vmul.f32 %v1100, %v1104
        %vm1106 = vweird.f32 %v1021
        %vm1107 = vweird.f32 %v1100
        %vm1108 = vmor %vm1106, %vm1107
        %v1109 = vsel %vm1108, %v1100, %v1105
        %v1110 = vrsqrt.pop %v1022
        %v1111 = vmul.f32 %v1110, %v1022
        %v1112 = vmul.f32 %v1111, %v1110
        %v1113 = vmul.f32 0.5, %v1112
        %v1114 = vsub.f32 1.5, %v1113
        %v1115 = vmul.f32 %v1110, %v1114
        %vm1116 = vweird.f32 %v1022
        %vm1117 = vweird.f32 %v1110
        %vm1118 = vmor %vm1116, %vm1117
        %v1119 = vsel %vm1118, %v1110, %v1115
        %v1120 = vrsqrt.pop %v1023
        %v1121 = vmul.f32 %v1120, %v1023
        %v1122 = vmul.f32 %v1121, %v1120
        %v1123 = vmul.f32 0.5, %v1122
        %v1124 = vsub.f32 1.5, %v1123
        %v1125 = vmul.f32 %v1120, %v1124
        %vm1126 = vweird.f32 %v1023
        %vm1127 = vweird.f32 %v1120
        %vm1128 = vmor %vm1126, %vm1127
        %v1129 = vsel %vm1128, %v1120, %v1125
        %v1130 = vrsqrt.pop %v1024
        %v1131 = vmul.f32 %v1130, %v1024
        %v1132 = vmul.f32 %v1131, %v1130
        %v1133 = vmul.f32 0.5, %v1132
        %v1134 = vsub.f32 1.5, %v1133
        %v1135 = vmul.f32 %v1130, %v1134
        %vm1136 = vweird.f32 %v1024
        %vm1137 = vweird.f32 %v1130
        %vm1138 = vmor %vm1136, %vm1137
        %v1139 = vsel %vm1138, %v1130, %v1135
        %v1140 = vrsqrt.pop %v1025
        %v1141 = vmul.f32 %v1140, %v1025
        %v1142 = vmul.f32 %v1141, %v1140
        %v1143 = vmul.f32 0.5, %v1142
        %v1144 = vsub.f32 1.5, %v1143
        %v1145 = vmul.f32 %v1140, %v1144
        %vm1146 = vweird.f32 %v1025
        %vm1147 = vweird.f32 %v1140
        %vm1148 = vmor %vm1146, %vm1147
        %v1149 = vsel %vm1148, %v1140, %v1145
        %v1150 = vrsqrt.pop %v1026
        %v1151 = vmul.f32 %v1150, %v1026
        %v1152 = vmul.f32 %v1151, %v1150
        %v1153 = vmul.f32 0.5, %v1152
        %v1154 = vsub.f32 1.5, %v1153
        %v1155 = vmul.f32 %v1150, %v1154
        %vm1156 = vweird.f32 %v1026
        %vm1157 = vweird.f32 %v1150
        %vm1158 = vmor %vm1156, %vm1157
        %v1159 = vsel %vm1158, %v1150, %v1155
        %v1160 = vrsqrt.pop %v1027
        %v1161 = vmul.f32 %v1160, %v1027
        %v1162 = vmul.f32 %v1161, %v1160
        %v1163 = vmul.f32 0.5, %v1162
        %v1164 = vsub.f32 1.5, %v1163
        %v1165 = vmul.f32 %v1160, %v1164
        %vm1166 = vweird.f32 %v1027
        %vm1167 = vweird.f32 %v1160
        %vm1168 = vmor %vm1166, %vm1167
        %v1169 = vsel %vm1168, %v1160, %v1165
        %v1170 = vrsqrt.pop %v1028
        %v1171 = vmul.f32 %v1170, %v1028
        %v1172 = vmul.f32 %v1171, %v1170
        %v1173 = vmul.f32 0.5, %v1172
        %v1174 = vsub.f32 1.5, %v1173
        %v1175 = vmul.f32 %v1170, %v1174
        %vm1176 = vweird.f32 %v1028
        %vm1177 = vweird.f32 %v1170
        %vm1178 = vmor %vm1176, %vm1177
        %v1179 = vsel %vm1178, %v1170, %v1175
        %v1180 = vrsqrt.pop %v1029
        %v1181 = vmul.f32 %v1180, %v1029
        %v1182 = vmul.f32 %v1181, %v1180
        %v1183 = vmul.f32 0.5, %v1182
        %v1184 = vsub.f32 1.5, %v1183
        %v1185 = vmul.f32 %v1180, %v1184
        %vm1186 = vweird.f32 %v1029
        %vm1187 = vweird.f32 %v1180
        %vm1188 = vmor %vm1186, %vm1187
        %v1189 = vsel %vm1188, %v1180, %v1185
        %v1190 = vmul.f32 %v918, %v1039
        %v1191 = vmul.f32 %v919, %v1049
        %v1192 = vmul.f32 %v920, %v1059
        %v1193 = vmul.f32 %v921, %v1069
        %v1194 = vmul.f32 %v922, %v1079
        %v1195 = vmul.f32 %v923, %v1089
        %v1196 = vmul.f32 %v924, %v1099
        %v1197 = vmul.f32 %v925, %v1109
        %v1198 = vmul.f32 %v926, %v1119
        %v1199 = vmul.f32 %v927, %v1129
        %v1200 = vmul.f32 %v928, %v1139
        %v1201 = vmul.f32 %v929, %v1149
        %v1202 = vmul.f32 %v930, %v1159
        %v1203 = vmul.f32 %v931, %v1169
        %v1204 = vmul.f32 %v932, %v1179
        %v1205 = vmul.f32 %v933, %v1189
        %v1206 = vld [vmem:[%s8] sm:$0x1]
        %v1208 = vperm.slane %v1206, 0
        %v1210 = vmul.f32 %v1190, %v1208
        %v1211 = vmul.f32 %v1191, %v1208
        %v1212 = vmul.f32 %v1192, %v1208
        %v1213 = vmul.f32 %v1193, %v1208
        %v1214 = vmul.f32 %v1194, %v1208
        %v1215 = vmul.f32 %v1195, %v1208
        %v1216 = vmul.f32 %v1196, %v1208
        %v1217 = vmul.f32 %v1197, %v1208
        %v1218 = vmul.f32 %v1198, %v1208
        %v1219 = vmul.f32 %v1199, %v1208
        %v1220 = vmul.f32 %v1200, %v1208
        %v1221 = vmul.f32 %v1201, %v1208
        %v1222 = vmul.f32 %v1202, %v1208
        %v1223 = vmul.f32 %v1203, %v1208
        %v1224 = vmul.f32 %v1204, %v1208
        %v1225 = vmul.f32 %v1205, %v1208
        %v1226 = vld [vmem:[%s9] sm:$0x1]
        %v1228 = vperm.slane %v1226, 0
        %v1230 = vadd.f32 %v1210, %v1228
        %v1231 = vadd.f32 %v1211, %v1228
        %v1232 = vadd.f32 %v1212, %v1228
        %v1233 = vadd.f32 %v1213, %v1228
        %v1234 = vadd.f32 %v1214, %v1228
        %v1235 = vadd.f32 %v1215, %v1228
        %v1236 = vadd.f32 %v1216, %v1228
        %v1237 = vadd.f32 %v1217, %v1228
        %v1238 = vadd.f32 %v1218, %v1228
        %v1239 = vadd.f32 %v1219, %v1228
        %v1240 = vadd.f32 %v1220, %v1228
        %v1241 = vadd.f32 %v1221, %v1228
        %v1242 = vadd.f32 %v1222, %v1228
        %v1243 = vadd.f32 %v1223, %v1228
        %v1244 = vadd.f32 %v1224, %v1228
        %v1245 = vadd.f32 %v1225, %v1228
        %1246 = vst.msk [vmem:[%s366] sm:$0xff] %vm600, %v1230
        %1247 = vst.msk [vmem:[%s366 + $0x8] sm:$0xff] %vm600, %v1231
        %1248 = vst.msk [vmem:[%s366 + $0x10] sm:$0xff] %vm600, %v1232
        %1249 = vst.msk [vmem:[%s366 + $0x18] sm:$0xff] %vm600, %v1233
        %1250 = vst.msk [vmem:[%s366 + $0x20] sm:$0xff] %vm600, %v1234
        %1251 = vst.msk [vmem:[%s366 + $0x28] sm:$0xff] %vm600, %v1235
        %1252 = vst.msk [vmem:[%s366 + $0x30] sm:$0xff] %vm600, %v1236
        %1253 = vst.msk [vmem:[%s366 + $0x38] sm:$0xff] %vm600, %v1237
        %1254 = vst.msk [vmem:[%s366 + $0x40] sm:$0xff] %vm600, %v1238
        %1255 = vst.msk [vmem:[%s366 + $0x48] sm:$0xff] %vm600, %v1239
        %1256 = vst.msk [vmem:[%s366 + $0x50] sm:$0xff] %vm600, %v1240
        %1257 = vst.msk [vmem:[%s366 + $0x58] sm:$0xff] %vm600, %v1241
        %1258 = vst.msk [vmem:[%s366 + $0x60] sm:$0xff] %vm600, %v1242
        %1259 = vst.msk [vmem:[%s366 + $0x68] sm:$0xff] %vm600, %v1243
        %1260 = vst.msk [vmem:[%s366 + $0x70] sm:$0xff] %vm600, %v1244
        %1261 = vst.msk [vmem:[%s366 + $0x78] sm:$0xff] %vm600, %v1245
        %s1262 = sand.u32 %s252, 1
        %s1263 = scalar_lea.sflag [#allocation3], %s1262
        %s1264 = sand.u32 %s252, 1
        %s1265 = smul.addr %s1264, 128
        %s1266 = scalar_lea.vmem [#allocation2], %s1265
        // Predicated region
        $region61: #{init_embedder_2d.1} parent=59 // pred_check
          %p1267 = pneg %p262
        $region62: #{init_embedder_2d.1} parent=59 // pred_check_branch
          %1269 = sbr.rel (%p1267) target = $region64
        $region63: #{init_embedder_2d.1} parent=59 // pred_region
          %s1270 = smul.u32 16, %s24
          %1272 = vsyncadd %s1263, 0
          %s1273 = smul.addr %s1270, 8
          %s1274 = scalar_lea.hbm %s10, %s1273
          %s1275 = sshll.u32 %s1266, 4
          %s1276 = int_to_ptr.vmem [resolvable:$true] %s1275
          %s1277 = sshll.u32 %s1274, 4
          %s1278 = int_to_ptr.hbm [resolvable:$true] %s1277
          %1283 = dma.vmem_to_hbm [thread:$0]  %s1276, 2048, %s1278, %s1263, 128, 128, 8
        $region64: #{init_embedder_2d.1} parent=59 // pred_fallthru
          _
      $region60: #{init_embedder_2d.1} parent=5 // pred_fallthru
        _
      %p1284 = scmp.le.s32.totalorder 2, %s19
      // Predicated region
      $region65: #{init_embedder_2d.1} parent=5 // pred_check
        %p1285 = pneg %p1284
      $region66: #{init_embedder_2d.1} parent=5 // pred_check_branch
        %1287 = sbr.rel (%p1285) target = $region68
      $region67: #{init_embedder_2d.1} parent=5 // pred_region
        %s1288 = ssub.s32 %s19, 2
        // Predicated region
        $region69: #{init_embedder_2d.1} parent=67 // pred_check
          %p1289 = pneg %p268
        $region70: #{init_embedder_2d.1} parent=67 // pred_check_branch
          %1291 = sbr.rel (%p1289) target = $region72
        $region71: #{init_embedder_2d.1} parent=67 // pred_region
          %s1292 = sand.u32 %s253, 1
          %s1293 = scalar_lea.sflag [#allocation3], %s1292
          %s1294 = sand.u32 %s253, 1
          %s1295 = smul.addr %s1294, 128
          %s1296 = scalar_lea.vmem [#allocation2], %s1295
          %1298 = dma.done %s1293, 2048
        $region72: #{init_embedder_2d.1} parent=67 // pred_fallthru
          _
      $region68: #{init_embedder_2d.1} parent=5 // pred_fallthru
        _
    $region6: #{init_embedder_2d.1} parent=1 // loop_footer
      %s23 = sadd.s32 1, %s19
    $region7: #{init_embedder_2d.1} parent=1 // loop_footer_branch
      %18 = sbr.rel target = $region3
    $region8: #{init_embedder_2d.1} parent=1 // loop_exit
      _
    %1299 = vsyncpa [#allocation3], 1
    %s1300 = scalar_lea.sflag [#allocation3], 1
    %1301 = vsyncpa %s1300, 1

</llo_original>
